<compile_context>
chip_gen: v6e
topology: v6e:2x2x1
jax: 0.10.0
libtpu: 0.0.40
codegen_flags: <defaults>
</compile_context>

<pallas_src>
import jax
import jax.numpy as jnp
from jax.experimental import pallas as pl
from jax.experimental.pallas import tpu as pltpu


def _round_up(x, m):
    return ((x + m - 1) // m) * m


# ----------------------------------------------------------------------------
# Fused linear-encode + squared-error partial-sum kernel.
# ----------------------------------------------------------------------------
def _make_fused_kernel(row_block, n_valid_rows):
    def kernel(x_ref, w_ref, b_ref, lab_ref, part_ref):
        i = pl.program_id(0)

        # Stand-in encoder: sentence_embedding = x @ W + b  (f32 accumulation).
        rep = jnp.dot(x_ref[...], w_ref[...], preferred_element_type=jnp.float32)
        rep = rep + b_ref[...]                                  # (tm, D)

        diff = rep - lab_ref[...].astype(jnp.float32)
        sq = diff * diff                                        # VPU only

        # Mask rows that only exist because of batch padding (global row >= B).
        row = jax.lax.broadcasted_iota(jnp.int32, sq.shape, 0) + i * row_block
        sq = jnp.where(row < n_valid_rows, sq, 0.0)

        # Fold (tm, D) -> (8, D): elementwise adds of (8, D) slabs, so the
        # per-step reduction stays on the VPU and the output block stays
        # sublane/lane aligned.
        part_ref[...] = jnp.sum(
            sq.reshape(row_block // 8, 8, sq.shape[-1]), axis=0
        )

    return kernel


# ----------------------------------------------------------------------------
# Wrapper: one pallas_call over row blocks; tiny host-side finish.
# ----------------------------------------------------------------------------
def mse_loss_fused(x, w, b, labels, *, row_block=256):
    B, Din = x.shape
    Dout = w.shape[1]
    assert labels.shape == (B, Dout)

    # Row block: multiple of 8, no larger than the (padded) batch.
    row_block = _round_up(max(8, min(row_block, _round_up(B, 8))), 8)
    n_blocks = pl.cdiv(B, row_block)
    b_padded = n_blocks * row_block
    if b_padded != B:
        x = jnp.pad(x, ((0, b_padded - B), (0, 0)))
        labels = jnp.pad(labels, ((0, b_padded - B), (0, 0)))

    # TODO(synk): for production Din, tile the contraction (K) axis with an
    # f32 VMEM accumulator instead of keeping W fully resident per step.
    kernel = _make_fused_kernel(row_block, B)

    partials = pl.pallas_call(
        kernel,
        out_shape=jax.ShapeDtypeStruct((n_blocks * 8, Dout), jnp.float32),
        grid=(n_blocks,),
        in_specs=[
            pl.BlockSpec((row_block, Din), lambda i: (i, 0)),    # x row block
            pl.BlockSpec((Din, Dout), lambda i: (0, 0)),         # W (resident)
            pl.BlockSpec((1, Dout), lambda i: (0, 0)),           # bias (resident)
            pl.BlockSpec((row_block, Dout), lambda i: (i, 0)),   # labels row block
        ],
        out_specs=pl.BlockSpec((8, Dout), lambda i: (i, 0)),     # per-block partials
        compiler_params=pltpu.CompilerParams(
            # Each grid step writes a distinct output block -> no cross-step
            # dependency, safe to shard across TensorCores (v7x megacore).
            dimension_semantics=("parallel",),
            # Tiles here are tiny; for large row_block / Din / Dout set
            # vmem_limit_bytes explicitly (keep 2 bufs x inputs well under
            # 64 MiB on v7x).
        ),
    )(x, w, b.reshape(1, Dout), labels)

    # Tiny finish: reduce the lane-dense partials and apply 'mean' reduction.
    return jnp.sum(partials) / jnp.float32(B * Dout)


# ----------------------------------------------------------------------------
# Full MSELoss.forward equivalent.
# ----------------------------------------------------------------------------
def mseloss_forward(sentence_features, labels, params, *, row_block=256):
    # TODO(synk): the real sentence-transformer encoder (transformer + pooling)
    # is external to this loss module; a linear projection stands in for it.
    x = sentence_features[0]["token_embeddings_pooled"]  # (B, Din)
    return mse_loss_fused(x, params["w"], params["b"], labels, row_block=row_block)


if __name__ == "__main__":
    key = jax.random.PRNGKey(0)
    # D is a multiple of 128 -> lane-dense vregs and unmasked stores.
    B, Din, D = 40, 64, 128

    k1, k2, k3, k4 = jax.random.split(key, 4)
    x = jax.random.normal(k1, (B, Din), dtype=jnp.float32)
    labels = jax.random.normal(k2, (B, D), dtype=jnp.float32)
    params = {
        "w": jax.random.normal(k3, (Din, D), dtype=jnp.float32) * 0.05,
        "b": jax.random.normal(k4, (D,), dtype=jnp.float32) * 0.01,
    }
    sentence_features = [{"token_embeddings_pooled": x}]

    # Reference (plain JAX).
    rep_ref = x @ params["w"] + params["b"]
    loss_ref = jnp.mean((rep_ref - labels) ** 2)

    # Default path: one large row block (B rounded up to a multiple of 8).
    loss = mseloss_forward(sentence_features, labels, params)
    jax.block_until_ready(loss)
    assert jnp.allclose(loss, loss_ref, rtol=1e-5, atol=1e-5), (loss, loss_ref)

    # Multi-block path exercising batch padding + in-kernel row masking.
    loss_tiled = mseloss_forward(sentence_features, labels, params, row_block=16)
    jax.block_until_ready(loss_tiled)
    assert jnp.allclose(loss_tiled, loss_ref, rtol=1e-5, atol=1e-5), (
        loss_tiled,
        loss_ref,
    )

    print("KERNEL_OK")
</pallas_src>

<mosaic_0001>
module attributes {stable_mosaic.version = 11 : i64} {
  func.func @kernel(%arg0: i32, %arg1: memref<40x64xf32, #tpu.memory_space<vmem>>, %arg2: memref<64x128xf32, #tpu.memory_space<vmem>>, %arg3: memref<1x128xf32, #tpu.memory_space<vmem>>, %arg4: memref<40x128xf32, #tpu.memory_space<vmem>>, %arg5: memref<8x128xf32, #tpu.memory_space<vmem>>) attributes {dimension_semantics = [#tpu.dimension_semantics<parallel>], iteration_bounds = array<i64: 1>, scalar_prefetch = 0 : i64, scratch_operands = 0 : i64, tpu.core_type = #tpu.core_type<tc>, window_params = [{transform_indices = @transform_0, window_bounds = array<i64: 40, 64>}, {pipeline_mode = #tpu.pipeline_mode<synchronous>, transform_indices = @transform_1, window_bounds = array<i64: 64, 128>}, {pipeline_mode = #tpu.pipeline_mode<synchronous>, transform_indices = @transform_2, window_bounds = array<i64: 1, 128>}, {transform_indices = @transform_3, window_bounds = array<i64: 40, 128>}, {transform_indices = @transform_4, window_bounds = array<i64: 8, 128>}]} {
    %c0 = arith.constant 0 : index
    %c0_0 = arith.constant 0 : index
    %0 = vector.load %arg1[%c0, %c0_0] : memref<40x64xf32, #tpu.memory_space<vmem>>, vector<40x64xf32>
    %c0_1 = arith.constant 0 : index
    %c0_2 = arith.constant 0 : index
    %1 = vector.load %arg2[%c0_1, %c0_2] : memref<64x128xf32, #tpu.memory_space<vmem>>, vector<64x128xf32>
    %cst = arith.constant dense<0.000000e+00> : vector<40x128xf32>
    %2 = tpu.matmul %0, %1, %cst {dimension_numbers = #tpu.dot_dimension_numbers<[1], [0], [0], [1], [0, 0, 1, 1], [], []>} : vector<40x64xf32>, vector<64x128xf32>, vector<40x128xf32> -> vector<40x128xf32>
    %c0_3 = arith.constant 0 : index
    %c0_4 = arith.constant 0 : index
    %3 = vector.load %arg3[%c0_3, %c0_4] : memref<1x128xf32, #tpu.memory_space<vmem>>, vector<1x128xf32>
    %4 = vector.broadcast %3 : vector<1x128xf32> to vector<40x128xf32>
    %5 = arith.addf %2, %4 : vector<40x128xf32>
    %c0_5 = arith.constant 0 : index
    %c0_6 = arith.constant 0 : index
    %6 = vector.load %arg4[%c0_5, %c0_6] : memref<40x128xf32, #tpu.memory_space<vmem>>, vector<40x128xf32>
    %7 = arith.subf %5, %6 : vector<40x128xf32>
    %8 = arith.mulf %7, %7 : vector<40x128xf32>
    %9 = tpu.iota {dimensions = array<i32: 0>} : vector<40x128xi32>
    %c40_i32 = arith.constant 40 : i32
    %10 = arith.muli %arg0, %c40_i32 : i32
    %11 = vector.broadcast %10 : i32 to vector<40x128xi32>
    %12 = arith.addi %9, %11 : vector<40x128xi32>
    %c40_i32_7 = arith.constant 40 : i32
    %13 = vector.broadcast %c40_i32_7 : i32 to vector<40x128xi32>
    %14 = arith.cmpi slt, %12, %13 : vector<40x128xi32>
    %cst_8 = arith.constant 0.000000e+00 : f32
    %15 = vector.broadcast %cst_8 : f32 to vector<40x128xf32>
    %16 = arith.select %14, %8, %15 : vector<40x128xi1>, vector<40x128xf32>
    %17 = vector.shape_cast %16 : vector<40x128xf32> to vector<5x8x128xf32>
    %cst_9 = arith.constant dense<0.000000e+00> : vector<8x128xf32>
    %18 = vector.multi_reduction <add>, %17, %cst_9 [0] : vector<5x8x128xf32> to vector<8x128xf32>
    %c0_10 = arith.constant 0 : index
    %c0_11 = arith.constant 0 : index
    %19 = vector.load %arg5[%c0_10, %c0_11] : memref<8x128xf32, #tpu.memory_space<vmem>>, vector<8x128xf32>
    tpu.vector_store %arg5[%c0_10, %c0_11], %18 {strides = array<i32>} : memref<8x128xf32, #tpu.memory_space<vmem>>, vector<8x128xf32>,
    return
  }
  func.func @transform_0(%arg0: i32) -> (i32, i32) {
    %c0_i32 = arith.constant 0 : i32
    %c0_i32_0 = arith.constant 0 : i32
    return %arg0, %c0_i32 : i32, i32
  }
  func.func @transform_1(%arg0: i32) -> (i32, i32) {
    %c0_i32 = arith.constant 0 : i32
    %c0_i32_0 = arith.constant 0 : i32
    %c0_i32_1 = arith.constant 0 : i32
    return %c0_i32, %c0_i32_0 : i32, i32
  }
  func.func @transform_2(%arg0: i32) -> (i32, i32) {
    %c0_i32 = arith.constant 0 : i32
    %c0_i32_0 = arith.constant 0 : i32
    %c0_i32_1 = arith.constant 0 : i32
    return %c0_i32, %c0_i32_0 : i32, i32
  }
  func.func @transform_3(%arg0: i32) -> (i32, i32) {
    %c0_i32 = arith.constant 0 : i32
    %c0_i32_0 = arith.constant 0 : i32
    return %arg0, %c0_i32 : i32, i32
  }
  func.func @transform_4(%arg0: i32) -> (i32, i32) {
    %c0_i32 = arith.constant 0 : i32
    %c0_i32_0 = arith.constant 0 : i32
    return %arg0, %c0_i32 : i32, i32
  }
}

</mosaic_0001>

<llo_original>
// kernel: tpu_custom_call.1
$region0: #{tpu_custom_call.1}
  #allocation0 [shape = 'u32[]', space=smem, size = 0x4, offset = 0x4, fixed_abs, tag = 'smem constant byte address 0x4 - core index']
  #allocation1 [shape = 'u32[144,128]{1,0:T(1,128)}', space=vmem, size = 0x12000, scoped, tag = 'internal scratch']
  %s0 = inlined_call_operand.hbm [shape: f32[40,64], index: 0, kind: input, shape index: {}]
  %s1 = inlined_call_operand.hbm [shape: f32[64,128], index: 1, kind: input, shape index: {}]
  %s2 = inlined_call_operand.vmem [shape: f32[1,128], index: 2, kind: input, shape index: {}]
  %s3 = inlined_call_operand.hbm [shape: f32[40,128], index: 3, kind: input, shape index: {}]
  %s4 = inlined_call_operand.hbm [shape: f32[8,128], index: 4, kind: output, shape index: {}]
  %s5 = sld [smem:[#allocation0]]
  $region38: #{tpu_custom_call.1} parent=0
    _
  %s7 = ssub.s32 1, %s5
  %s8 = scalar_select 0, %s7, %s5
  $region1: #{tpu_custom_call.1} parent=0
    #allocation2 [shape = 'u8[20480]{0}', space=vmem, size = 0x5000, scoped, tag = 'input window, operand 0, single buffered']
    #allocation3 [shape = 's32[1]{0}', space=sflag, size = 0x4, scoped, tag = 'scoped memory for tpu_custom_call.1']
    #allocation4 [shape = 's32[1]{0}', space=sflag, size = 0x4, scoped, tag = 'scoped memory for tpu_custom_call.1']
    #allocation5 [shape = 'u8[32768]{0}', space=vmem, size = 0x8000, scoped, tag = 'input window, operand 1, single buffered']
    #allocation6 [shape = 's32[1]{0}', space=sflag, size = 0x4, scoped, tag = 'scoped memory for tpu_custom_call.1']
    #allocation7 [shape = 'u8[20480]{0}', space=vmem, size = 0x5000, scoped, tag = 'input window, operand 3, single buffered']
    #allocation8 [shape = 'u8[4096]{0}', space=vmem, size = 0x1000, scoped, tag = 'output window, operand 0, single buffered']
    %9 = vsyncpa [#allocation3], 0
    %10 = vsyncpa [#allocation6], 0
    %11 = vsyncpa [#allocation4], 0
    // Predicated region
    $region2: #{tpu_custom_call.1} parent=1 // pred_check
      _
    $region3: #{tpu_custom_call.1} parent=1 // pred_check_branch
      %13 = sbr.rel (0) target = $region5
    $region4: #{tpu_custom_call.1} parent=1 // pred_region
      %s15 = ssub.s32 640, 640
      %16 = vsyncadd [#allocation3], %s15
      %s17 = sshll.u32 [#allocation2], 4
      %s18 = int_to_ptr.vmem [resolvable:$true] %s17
      %23 = dma.hbm_to_vmem [thread:$0]  %s0, 640, %s18, [#allocation3], 128, 128, 8
    $region5: #{tpu_custom_call.1} parent=1 // pred_fallthru
      _
    // Predicated region
    $region6: #{tpu_custom_call.1} parent=1 // pred_check
      _
    $region7: #{tpu_custom_call.1} parent=1 // pred_check_branch
      %25 = sbr.rel (0) target = $region9
    $region8: #{tpu_custom_call.1} parent=1 // pred_region
      %s27 = ssub.s32 1024, 1024
      %28 = vsyncadd [#allocation6], %s27
      %s29 = sshll.u32 [#allocation5], 4
      %s30 = int_to_ptr.vmem [resolvable:$true] %s29
      %35 = dma.hbm_to_vmem [thread:$0]  %s1, 1024, %s30, [#allocation6], 128, 128, 8
    $region9: #{tpu_custom_call.1} parent=1 // pred_fallthru
      _
    // Predicated region
    $region10: #{tpu_custom_call.1} parent=1 // pred_check
      _
    $region11: #{tpu_custom_call.1} parent=1 // pred_check_branch
      %37 = sbr.rel (0) target = $region13
    $region12: #{tpu_custom_call.1} parent=1 // pred_region
      _
    $region13: #{tpu_custom_call.1} parent=1 // pred_fallthru
      _
    // Predicated region
    $region14: #{tpu_custom_call.1} parent=1 // pred_check
      _
    $region15: #{tpu_custom_call.1} parent=1 // pred_check_branch
      %39 = sbr.rel (0) target = $region17
    $region16: #{tpu_custom_call.1} parent=1 // pred_region
      %s41 = ssub.s32 640, 640
      %42 = vsyncadd [#allocation6], %s41
      %s43 = sshll.u32 [#allocation7], 4
      %s44 = int_to_ptr.vmem [resolvable:$true] %s43
      %49 = dma.hbm_to_vmem [thread:$0]  %s3, 640, %s44, [#allocation6], 128, 128, 8
    $region17: #{tpu_custom_call.1} parent=1 // pred_fallthru
      _
    // Predicated region
    $region18: #{tpu_custom_call.1} parent=1 // pred_check
      _
    $region19: #{tpu_custom_call.1} parent=1 // pred_check_branch
      %51 = sbr.rel (0) target = $region21
    $region20: #{tpu_custom_call.1} parent=1 // pred_region
      %52 = dma.done [#allocation3], 640
    $region21: #{tpu_custom_call.1} parent=1 // pred_fallthru
      _
    // Predicated region
    $region22: #{tpu_custom_call.1} parent=1 // pred_check
      _
    $region23: #{tpu_custom_call.1} parent=1 // pred_check_branch
      %54 = sbr.rel (0) target = $region25
    $region24: #{tpu_custom_call.1} parent=1 // pred_region
      %55 = dma.done [#allocation6], 1024
    $region25: #{tpu_custom_call.1} parent=1 // pred_fallthru
      _
    // Predicated region
    $region26: #{tpu_custom_call.1} parent=1 // pred_check
      _
    $region27: #{tpu_custom_call.1} parent=1 // pred_check_branch
      %57 = sbr.rel (0) target = $region29
    $region28: #{tpu_custom_call.1} parent=1 // pred_region
      %58 = dma.done [#allocation6], 640
    $region29: #{tpu_custom_call.1} parent=1 // pred_fallthru
      _
    %v59 = vld [vmem:[#allocation2] sm:$0xff]
    %v60 = vld [vmem:[#allocation2 + $0x8] sm:$0xff]
    %v61 = vld [vmem:[#allocation2 + $0x10] sm:$0xff]
    %v62 = vld [vmem:[#allocation2 + $0x18] sm:$0xff]
    %v63 = vld [vmem:[#allocation2 + $0x20] sm:$0xff]
    %v64 = vld [vmem:[#allocation5] sm:$0xff]
    %v65 = vld [vmem:[#allocation5 + $0x8] sm:$0xff]
    %v66 = vld [vmem:[#allocation5 + $0x10] sm:$0xff]
    %v67 = vld [vmem:[#allocation5 + $0x18] sm:$0xff]
    %v68 = vld [vmem:[#allocation5 + $0x20] sm:$0xff]
    %v69 = vld [vmem:[#allocation5 + $0x28] sm:$0xff]
    %v70 = vld [vmem:[#allocation5 + $0x30] sm:$0xff]
    %v71 = vld [vmem:[#allocation5 + $0x38] sm:$0xff]
    %v72 = vld [vmem:[%s2] sm:$0x1]
    %v74 = vlaneseq
    %v75 = vshrl.u32 %v74, 7
    %v76 = vsub.s32 0, %v75
    %v77 = vrot.slane %v72, %v76
    %vm79 = vcmask 523264
    %v81 = vsel %vm79, %v59, 0
    %v84 = vsel %vm79, %v60, 0
    %v87 = vsel %vm79, %v61, 0
    %v90 = vsel %vm79, %v62, 0
    %v93 = vsel %vm79, %v63, 0
    %95 = vmatprep.subr.mxu0 0.0
    %96 = vmatpush1.msra.mxu0 0.0
    %97 = vmatprep.subr.mxu0 0.0
    %98 = vmatpush1.msra.mxu0 0.0
    %99 = vmatprep.subr.mxu0 0.0
    %100 = vmatpush1.msra.mxu0 0.0
    %101 = vmatprep.subr.mxu0 0.0
    %102 = vmatpush1.msra.mxu0 0.0
    %103 = vmatprep.subr.mxu0 0.0
    %104 = vmatpush1.msra.mxu0 0.0
    %105 = vmatprep.subr.mxu0 0.0
    %106 = vmatpush1.msra.mxu0 0.0
    %107 = vmatprep.subr.mxu0 0.0
    %108 = vmatpush1.msra.mxu0 0.0
    %109 = vmatprep.subr.mxu0 0.0
    %110 = vmatpush1.msra.mxu0 0.0
    %111 = vmatprep.subr.mxu0 0.0
    %112 = vmatpush1.msra.mxu0 %v71
    %113 = vmatprep.subr.mxu0 0.0
    %114 = vmatpush1.msra.mxu0 %v70
    %115 = vmatprep.subr.mxu0 0.0
    %116 = vmatpush1.msra.mxu0 %v69
    %117 = vmatprep.subr.mxu0 0.0
    %118 = vmatpush1.msra.mxu0 %v68
    %119 = vmatprep.subr.mxu0 0.0
    %120 = vmatpush1.msra.mxu0 %v67
    %121 = vmatprep.subr.mxu0 0.0
    %122 = vmatpush1.msra.mxu0 %v66
    %123 = vmatprep.subr.mxu0 0.0
    %124 = vmatpush1.msra.mxu0 %v65
    %125 = vmatprep.subr.mxu0 0.0
    %126 = vmatpush1.msra.mxu0 %v64
    %127 = vmatprep.subr.mxu0 0.0
    %128 = vmatpush2.msra.mxu0 0.0
    %129 = vmatprep.subr.mxu0 0.0
    %130 = vmatpush2.msra.mxu0 0.0
    %131 = vmatprep.subr.mxu0 0.0
    %132 = vmatpush2.msra.mxu0 0.0
    %133 = vmatprep.subr.mxu0 0.0
    %134 = vmatpush2.msra.mxu0 0.0
    %135 = vmatprep.subr.mxu0 0.0
    %136 = vmatpush2.msra.mxu0 0.0
    %137 = vmatprep.subr.mxu0 0.0
    %138 = vmatpush2.msra.mxu0 0.0
    %139 = vmatprep.subr.mxu0 0.0
    %140 = vmatpush2.msra.mxu0 0.0
    %141 = vmatprep.subr.mxu0 0.0
    %142 = vmatpush2.msra.mxu0 0.0
    %143 = vmatprep.subr.mxu0 0.0
    %144 = vmatpush2.msra.mxu0 0.0
    %145 = vmatprep.subr.mxu0 0.0
    %146 = vmatpush2.msra.mxu0 0.0
    %147 = vmatprep.subr.mxu0 0.0
    %148 = vmatpush2.msra.mxu0 0.0
    %149 = vmatprep.subr.mxu0 0.0
    %150 = vmatpush2.msra.mxu0 0.0
    %151 = vmatprep.subr.mxu0 0.0
    %152 = vmatpush2.msra.mxu0 0.0
    %153 = vmatprep.subr.mxu0 0.0
    %154 = vmatpush2.msra.mxu0 0.0
    %155 = vmatprep.subr.mxu0 0.0
    %156 = vmatpush2.msra.mxu0 0.0
    %157 = vmatprep.subr.mxu0 0.0
    %158 = vmatpush2.msra.mxu0 0.0
    %159 = vmatprep.mubr.f32.mxu0 0.0
    %160 = vmatmul.mubr.f32.gmra.mxu0 %v81
    %v161 = vpop.f32.mrf.mxu0
    %v162 = vadd.f32 %v77, %v161
    %v163 = vpop.f32.mrf.mxu0
    %164 = vmatprep.mubr.f32.mxu0 0.0
    %165 = vmatmul.mubr.f32.gmra.mxu0 %v84
    %v166 = vpop.f32.mrf.mxu0
    %v167 = vadd.f32 %v77, %v166
    %v168 = vpop.f32.mrf.mxu0
    %169 = vmatprep.mubr.f32.mxu0 0.0
    %170 = vmatmul.mubr.f32.gmra.mxu0 %v87
    %v171 = vpop.f32.mrf.mxu0
    %v172 = vadd.f32 %v77, %v171
    %v173 = vpop.f32.mrf.mxu0
    %174 = vmatprep.mubr.f32.mxu0 0.0
    %175 = vmatmul.mubr.f32.gmra.mxu0 %v90
    %v176 = vpop.f32.mrf.mxu0
    %v177 = vadd.f32 %v77, %v176
    %v178 = vpop.f32.mrf.mxu0
    %179 = vmatprep.mubr.f32.mxu0 0.0
    %180 = vmatmul.mubr.f32.gmra.mxu0 %v93
    %v181 = vpop.f32.mrf.mxu0
    %v182 = vadd.f32 %v77, %v181
    %v183 = vpop.f32.mrf.mxu0
    %184 = vdwg.mxu0
    %v185 = vld [vmem:[#allocation7] sm:$0xff]
    %v186 = vld [vmem:[#allocation7 + $0x8] sm:$0xff]
    %v187 = vld [vmem:[#allocation7 + $0x10] sm:$0xff]
    %v188 = vld [vmem:[#allocation7 + $0x18] sm:$0xff]
    %v189 = vld [vmem:[#allocation7 + $0x20] sm:$0xff]
    %v190 = vsub.f32 %v162, %v185
    %v191 = vsub.f32 %v167, %v186
    %v192 = vsub.f32 %v172, %v187
    %v193 = vsub.f32 %v177, %v188
    %v194 = vsub.f32 %v182, %v189
    %v195 = vmul.f32 %v190, %v190
    %v196 = vmul.f32 %v191, %v191
    %v197 = vmul.f32 %v192, %v192
    %v198 = vmul.f32 %v193, %v193
    %v199 = vmul.f32 %v194, %v194
    %v200 = vlaneseq
    %v201 = vshrl.u32 %v200, 7
    %v202 = vadd.s32 %v201, 8
    %v203 = vadd.s32 %v201, 16
    %v204 = vadd.s32 %v201, 24
    %v205 = vadd.s32 %v201, 32
    %s206 = smul.u32 0, 40
    %v207 = vstv %s206
    %v208 = vadd.s32 %v201, %v207
    %v209 = vadd.s32 %v202, %v207
    %v210 = vadd.s32 %v203, %v207
    %v211 = vadd.s32 %v204, %v207
    %v212 = vadd.s32 %v205, %v207
    %vm213 = vcmp.lt.s32.totalorder %v208, 40
    %vm214 = vcmp.lt.s32.totalorder %v209, 40
    %vm215 = vcmp.lt.s32.totalorder %v210, 40
    %vm216 = vcmp.lt.s32.totalorder %v211, 40
    %vm217 = vcmp.lt.s32.totalorder %v212, 40
    %v218 = vsel %vm213, %v195, 0.0
    %v219 = vsel %vm214, %v196, 0.0
    %v220 = vsel %vm215, %v197, 0.0
    %v221 = vsel %vm216, %v198, 0.0
    %v222 = vsel %vm217, %v199, 0.0
    %v223 = vadd.f32 %v218, %v219
    %v224 = vadd.f32 %v223, %v220
    %v225 = vadd.f32 %v224, %v221
    %v226 = vadd.f32 %v225, %v222
    %227 = vst [vmem:[#allocation8] sm:$0xff] %v226
    // Predicated region
    $region30: #{tpu_custom_call.1} parent=1 // pred_check
      _
    $region31: #{tpu_custom_call.1} parent=1 // pred_check_branch
      %229 = sbr.rel (0) target = $region33
    $region32: #{tpu_custom_call.1} parent=1 // pred_region
      %s231 = ssub.s32 128, 128
      %232 = vsyncadd [#allocation4], %s231
      %s234 = sshll.u32 [#allocation8], 4
      %s235 = int_to_ptr.vmem [resolvable:$true] %s234
      %237 = dma.vmem_to_hbm [thread:$0]  %s235, 128, %s4, [#allocation4]
    $region33: #{tpu_custom_call.1} parent=1 // pred_fallthru
      _
    // Predicated region
    $region34: #{tpu_custom_call.1} parent=1 // pred_check
      _
    $region35: #{tpu_custom_call.1} parent=1 // pred_check_branch
      %239 = sbr.rel (0) target = $region37
    $region36: #{tpu_custom_call.1} parent=1 // pred_region
      %240 = dma.done [#allocation4], 128
    $region37: #{tpu_custom_call.1} parent=1 // pred_fallthru
      _
    %241 = vsyncpa [#allocation3], 1
    %242 = vsyncpa [#allocation6], 1
    %243 = vsyncpa [#allocation4], 1

</llo_original>
